<compile_context>
chip_gen: v6e
topology: v6e:2x2x1
jax: 0.10.0
libtpu: 0.0.40
codegen_flags: <defaults>
</compile_context>

<pallas_src>
import functools

import jax
import jax.numpy as jnp
from jax.experimental import pallas as pl
from jax.experimental.pallas import tpu as pltpu

SELU_ALPHA = 1.6732632423543772
SELU_SCALE = 1.0507009873554805

_LANES = 128


def _round_up(x, m):
    return ((x + m - 1) // m) * m


def _supports_bf16_elementwise():
    """bf16 VPU/EUP exists on v6e/v7x; v5e (and older) would emulate it -> keep f32."""
    try:
        kind = jax.devices()[0].device_kind.lower()
    except Exception:
        return False
    return ("v6" in kind) or ("v7" in kind)


def _model_kernel(category_size, half, act_dtype,
                  x_ref, w1_ref, wstack_ref, bias_ref, out_ref):
    x = x_ref[...]                               # [TB, IN] bf16 (cast host-side)
    b32 = bias_ref[...]                          # [8, 128] f32
    b = b32.astype(act_dtype)                    # biases for the elementwise chain
    # (1, 128) lane index; broadcast against [TB, 128] activations (no full-tile iota).
    lanes = jax.lax.broadcasted_iota(jnp.int32, (1, _LANES), 1)

    def mm(a, w):
        # bf16 MXU matmul with f32 accumulation.
        return jnp.dot(a.astype(jnp.bfloat16), w, preferred_element_type=jnp.float32)

    def selu_noscale(v):
        # SELU without the outer scale (folded into the next layer's packed weights).
        return jnp.where(v > 0, v, SELU_ALPHA * (jnp.exp(v) - 1.0))

    # fc1, fc2: input -> 128 -> 128
    h = selu_noscale(mm(x, w1_ref[...]).astype(act_dtype) + b[0:1, :])
    h = selu_noscale(mm(h, wstack_ref[0]).astype(act_dtype) + b[1:2, :])

    # fc3 (output zero-padded to 128 lanes: [nf(64) | 0])
    nf = selu_noscale(mm(h, wstack_ref[1]).astype(act_dtype) + b[2:3, :])

    # fc4 | fc5 fused into one 128-lane matmul: rc = [r(64) | c(64)]
    rc = selu_noscale(mm(nf, wstack_ref[2]).astype(act_dtype) + b[3:4, :])

    # fc6 acts only on the c half (block weight); keep r in lanes [0, half)
    t = selu_noscale(mm(rc, wstack_ref[3]).astype(act_dtype) + b[4:5, :])
    rc2 = jnp.where(lanes < half, rc, t)         # [r | selu(c @ W6 + b6)]

    # fused heads: lanes [0, C) = classifier logits, lanes [C, C+R) = regression
    pre = mm(rc2, wstack_ref[4]) + b32[5:6, :]   # f32

    # log-softmax over the classifier lanes only (masked reduction kept in f32)
    is_cls = lanes < category_size
    m = jnp.max(jnp.where(is_cls, pre, -jnp.inf), axis=1, keepdims=True)
    shifted = pre - m
    p = jnp.where(is_cls, jnp.exp(shifted), 0.0)
    lse = jnp.log(jnp.sum(p, axis=1, keepdims=True))
    out_ref[...] = jnp.where(is_cls, shifted - lse, pre)


def pack_params(p, input_size, hidden_size, category_size):
    """Pack raw f32 params ([in,out] weights, [1,out] biases) into kernel operands.

    The SELU output scale is folded into every weight that consumes a SELU output
    (everything except w1), so the kernel uses the scale-free SELU.
    """
    h4 = hidden_size * 4
    h2 = hidden_size * 2
    reg = input_size + 1
    L = _LANES
    assert h4 == L and 2 * h2 == L, "packing assumes hidden_size * 4 == 128"
    assert category_size + reg <= L, "both heads must fit in one 128-lane slab"

    f32, bf16 = jnp.float32, jnp.bfloat16
    S = SELU_SCALE

    w3p = jnp.pad(p["w3"], ((0, 0), (0, L - h2)))                        # [128,128]
    w45 = jnp.concatenate([p["w4"], p["w5"]], axis=1)                    # [64,128]
    w45p = jnp.pad(w45, ((0, L - h2), (0, 0)))                           # [128,128]
    w6p = jnp.zeros((L, L), f32).at[h2:, h2:].set(p["w6"])               # [128,128]
    wheads = (jnp.zeros((L, L), f32)
              .at[:h2, category_size:category_size + reg].set(p["wr"])
              .at[h2:, :category_size].set(p["wc"]))                     # [128,128]
    wstack = jnp.stack(
        [S * p["w2"], S * w3p, S * w45p, S * w6p, S * wheads]).astype(bf16)  # [5,128,128]

    def row(x, offset=0):
        return jnp.zeros((1, L), f32).at[:, offset:offset + x.shape[1]].set(x)

    bias = jnp.concatenate([
        row(p["b1"]),
        row(p["b2"]),
        row(p["b3"]),
        jnp.concatenate([p["b4"], p["b5"]], axis=1),
        row(p["b6"], offset=h2),
        row(p["bc"]).at[:, category_size:category_size + reg].set(p["br"]),
        jnp.zeros((2, L), f32),
    ], axis=0)                                                           # [8,128]

    return {"w1": p["w1"].astype(bf16), "wstack": wstack, "bias": bias}


def model_forward(features, packed, input_size, category_size, use_bf16_elementwise=None):
    """features: [B, input_size]; packed: output of pack_params."""
    B, in_size = features.shape
    reg_size = input_size + 1
    L = _LANES

    if use_bf16_elementwise is None:
        use_bf16_elementwise = _supports_bf16_elementwise()
    act_dtype = jnp.bfloat16 if use_bf16_elementwise else jnp.float32

    # Host-side bf16 cast: halves the input HBM/DMA stream, removes the in-kernel cast.
    features = features.astype(jnp.bfloat16)

    # Batch tiling: large tiles amortize per-grid-step overhead; cdiv(B,2) keeps the
    # (parallel) grid at >= 2 steps for large B so both v7x TensorCores get work.
    TB = min(1024, _round_up(max(pl.cdiv(B, 2), 8), 16))
    B_pad = _round_up(B, TB)
    if B_pad != B:
        features = jnp.pad(features, ((0, B_pad - B), (0, 0)))

    kernel = functools.partial(_model_kernel, category_size, L // 2, act_dtype)

    out = pl.pallas_call(
        kernel,
        out_shape=jax.ShapeDtypeStruct((B_pad, L), jnp.float32),
        grid=(B_pad // TB,),
        in_specs=[
            pl.BlockSpec((TB, in_size), lambda i: (i, 0)),
            pl.BlockSpec(packed["w1"].shape, lambda i: (0, 0)),
            pl.BlockSpec(packed["wstack"].shape, lambda i: (0, 0, 0)),
            pl.BlockSpec(packed["bias"].shape, lambda i: (0, 0)),
        ],
        out_specs=pl.BlockSpec((TB, L), lambda i: (i, 0)),
        compiler_params=pltpu.CompilerParams(dimension_semantics=("parallel",)),
    )(features, packed["w1"], packed["wstack"], packed["bias"])

    logits = out[:B, :category_size]
    regression = out[:B, category_size:category_size + reg_size]
    return logits, regression


def init_params(key, input_size, hidden_size, category_size):
    """Deterministic parameter init (weights as [in, out], biases as [1, out])."""
    h4 = hidden_size * 4
    h2 = hidden_size * 2
    dims = {
        "1": (input_size, h4),
        "2": (h4, h4),
        "3": (h4, h2),
        "4": (h2, h2),
        "5": (h2, h2),
        "6": (h2, h2),
        "r": (h2, input_size + 1),
        "c": (h2, category_size),
    }
    params = {}
    keys = jax.random.split(key, 2 * len(dims))
    for i, (name, (din, dout)) in enumerate(dims.items()):
        bound = 1.0 / jnp.sqrt(jnp.float32(din))
        params[f"w{name}"] = jax.random.uniform(
            keys[2 * i], (din, dout), jnp.float32, -bound, bound)
        params[f"b{name}"] = jax.random.uniform(
            keys[2 * i + 1], (1, dout), jnp.float32, -bound, bound)
    return params


def reference_forward(features, params):
    """Pure-JAX reference: straight per-layer forward (bf16 MXU inputs, f32 math)."""
    bf = jnp.bfloat16

    def lin(x, n):
        return jnp.dot(x.astype(bf), params[f"w{n}"].astype(bf),
                       preferred_element_type=jnp.float32) + params[f"b{n}"]

    def selu(x):
        return SELU_SCALE * jnp.where(x > 0, x, SELU_ALPHA * (jnp.exp(x) - 1.0))

    h = selu(lin(features, "1"))
    h = selu(lin(h, "2"))
    nf = selu(lin(h, "3"))
    r = selu(lin(nf, "4"))
    regression = lin(r, "r")
    c = selu(lin(nf, "5"))
    c = selu(lin(c, "6"))
    cl = lin(c, "c")
    return jax.nn.log_softmax(cl, axis=1), regression


if __name__ == "__main__":
    B = 8
    input_size = 32
    hidden_size = 32
    category_size = 8

    key = jax.random.PRNGKey(0)
    k_x, k_p = jax.random.split(key)
    features = jax.random.normal(k_x, (B, input_size), dtype=jnp.float32)
    params = init_params(k_p, input_size, hidden_size, category_size)
    packed = pack_params(params, input_size, hidden_size, category_size)

    use_bf16 = _supports_bf16_elementwise()
    logits, regression = model_forward(
        features, packed, input_size, category_size, use_bf16_elementwise=use_bf16)
    jax.block_until_ready((logits, regression))

    ref_logits, ref_regression = reference_forward(features, params)
    assert logits.shape == (B, category_size)
    assert regression.shape == (B, input_size + 1)
    # Looser tolerance when the elementwise chain runs in bf16 (v6e/v7x fast path).
    tol = 5e-2 if use_bf16 else 1e-2
    assert jnp.allclose(logits, ref_logits, atol=tol, rtol=tol)
    assert jnp.allclose(regression, ref_regression, atol=tol, rtol=tol)

    print("KERNEL_OK")
</pallas_src>

<mosaic_0001>
module attributes {stable_mosaic.version = 11 : i64} {
  func.func @_model_kernel(%arg0: i32, %arg1: memref<16x32xbf16, #tpu.memory_space<vmem>>, %arg2: memref<32x128xbf16, #tpu.memory_space<vmem>>, %arg3: memref<5x128x128xbf16, #tpu.memory_space<vmem>>, %arg4: memref<8x128xf32, #tpu.memory_space<vmem>>, %arg5: memref<16x128xf32, #tpu.memory_space<vmem>>) attributes {dimension_semantics = [#tpu.dimension_semantics<parallel>], iteration_bounds = array<i64: 1>, scalar_prefetch = 0 : i64, scratch_operands = 0 : i64, tpu.core_type = #tpu.core_type<tc>, window_params = [{transform_indices = @transform_0, window_bounds = array<i64: 16, 32>}, {pipeline_mode = #tpu.pipeline_mode<synchronous>, transform_indices = @transform_1, window_bounds = array<i64: 32, 128>}, {pipeline_mode = #tpu.pipeline_mode<synchronous>, transform_indices = @transform_2, window_bounds = array<i64: 5, 128, 128>}, {pipeline_mode = #tpu.pipeline_mode<synchronous>, transform_indices = @transform_3, window_bounds = array<i64: 8, 128>}, {transform_indices = @transform_4, window_bounds = array<i64: 16, 128>}]} {
    %c0 = arith.constant 0 : index
    %c0_0 = arith.constant 0 : index
    %0 = vector.load %arg1[%c0, %c0_0] : memref<16x32xbf16, #tpu.memory_space<vmem>>, vector<16x32xbf16>
    %c0_1 = arith.constant 0 : index
    %c0_2 = arith.constant 0 : index
    %1 = vector.load %arg4[%c0_1, %c0_2] : memref<8x128xf32, #tpu.memory_space<vmem>>, vector<8x128xf32>
    %2 = tpu.iota {dimensions = array<i32: 1>} : vector<1x128xi32>
    %c0_3 = arith.constant 0 : index
    %c0_4 = arith.constant 0 : index
    %3 = vector.load %arg2[%c0_3, %c0_4] : memref<32x128xbf16, #tpu.memory_space<vmem>>, vector<32x128xbf16>
    %cst = arith.constant dense<0.000000e+00> : vector<16x128xf32>
    %4 = tpu.matmul %0, %3, %cst {dimension_numbers = #tpu.dot_dimension_numbers<[1], [0], [0], [1], [0, 0, 1, 1], [], []>} : vector<16x32xbf16>, vector<32x128xbf16>, vector<16x128xf32> -> vector<16x128xf32>
    %5 = vector.extract_strided_slice %1 {offsets = [0, 0], sizes = [1, 128], strides = [1, 1]} : vector<8x128xf32> to vector<1x128xf32>
    %6 = vector.broadcast %5 : vector<1x128xf32> to vector<16x128xf32>
    %7 = arith.addf %4, %6 : vector<16x128xf32>
    %cst_5 = arith.constant 0.000000e+00 : f32
    %8 = vector.broadcast %cst_5 : f32 to vector<16x128xf32>
    %9 = arith.cmpf ogt, %7, %8 : vector<16x128xf32>
    %10 = math.exp %7 : vector<16x128xf32>
    %cst_6 = arith.constant 1.000000e+00 : f32
    %11 = vector.broadcast %cst_6 : f32 to vector<16x128xf32>
    %12 = arith.subf %10, %11 : vector<16x128xf32>
    %cst_7 = arith.constant 1.67326319 : f32
    %13 = vector.broadcast %cst_7 : f32 to vector<16x128xf32>
    %14 = arith.mulf %13, %12 : vector<16x128xf32>
    %15 = arith.select %9, %7, %14 : vector<16x128xi1>, vector<16x128xf32>
    %c0_8 = arith.constant 0 : index
    %c0_9 = arith.constant 0 : index
    %c0_10 = arith.constant 0 : index
    %16 = vector.load %arg3[%c0_8, %c0_9, %c0_10] : memref<5x128x128xbf16, #tpu.memory_space<vmem>>, vector<1x128x128xbf16>
    %17 = vector.shape_cast %16 : vector<1x128x128xbf16> to vector<128x128xbf16>
    %18 = arith.truncf %15 : vector<16x128xf32> to vector<16x128xbf16>
    %cst_11 = arith.constant dense<0.000000e+00> : vector<16x128xf32>
    %19 = tpu.matmul %18, %17, %cst_11 {dimension_numbers = #tpu.dot_dimension_numbers<[1], [0], [0], [1], [0, 0, 1, 1], [], []>} : vector<16x128xbf16>, vector<128x128xbf16>, vector<16x128xf32> -> vector<16x128xf32>
    %20 = vector.extract_strided_slice %1 {offsets = [1, 0], sizes = [1, 128], strides = [1, 1]} : vector<8x128xf32> to vector<1x128xf32>
    %21 = vector.broadcast %20 : vector<1x128xf32> to vector<16x128xf32>
    %22 = arith.addf %19, %21 : vector<16x128xf32>
    %cst_12 = arith.constant 0.000000e+00 : f32
    %23 = vector.broadcast %cst_12 : f32 to vector<16x128xf32>
    %24 = arith.cmpf ogt, %22, %23 : vector<16x128xf32>
    %25 = math.exp %22 : vector<16x128xf32>
    %cst_13 = arith.constant 1.000000e+00 : f32
    %26 = vector.broadcast %cst_13 : f32 to vector<16x128xf32>
    %27 = arith.subf %25, %26 : vector<16x128xf32>
    %cst_14 = arith.constant 1.67326319 : f32
    %28 = vector.broadcast %cst_14 : f32 to vector<16x128xf32>
    %29 = arith.mulf %28, %27 : vector<16x128xf32>
    %30 = arith.select %24, %22, %29 : vector<16x128xi1>, vector<16x128xf32>
    %c1 = arith.constant 1 : index
    %c0_15 = arith.constant 0 : index
    %c0_16 = arith.constant 0 : index
    %31 = vector.load %arg3[%c1, %c0_15, %c0_16] : memref<5x128x128xbf16, #tpu.memory_space<vmem>>, vector<1x128x128xbf16>
    %32 = vector.shape_cast %31 : vector<1x128x128xbf16> to vector<128x128xbf16>
    %33 = arith.truncf %30 : vector<16x128xf32> to vector<16x128xbf16>
    %cst_17 = arith.constant dense<0.000000e+00> : vector<16x128xf32>
    %34 = tpu.matmul %33, %32, %cst_17 {dimension_numbers = #tpu.dot_dimension_numbers<[1], [0], [0], [1], [0, 0, 1, 1], [], []>} : vector<16x128xbf16>, vector<128x128xbf16>, vector<16x128xf32> -> vector<16x128xf32>
    %35 = vector.extract_strided_slice %1 {offsets = [2, 0], sizes = [1, 128], strides = [1, 1]} : vector<8x128xf32> to vector<1x128xf32>
    %36 = vector.broadcast %35 : vector<1x128xf32> to vector<16x128xf32>
    %37 = arith.addf %34, %36 : vector<16x128xf32>
    %cst_18 = arith.constant 0.000000e+00 : f32
    %38 = vector.broadcast %cst_18 : f32 to vector<16x128xf32>
    %39 = arith.cmpf ogt, %37, %38 : vector<16x128xf32>
    %40 = math.exp %37 : vector<16x128xf32>
    %cst_19 = arith.constant 1.000000e+00 : f32
    %41 = vector.broadcast %cst_19 : f32 to vector<16x128xf32>
    %42 = arith.subf %40, %41 : vector<16x128xf32>
    %cst_20 = arith.constant 1.67326319 : f32
    %43 = vector.broadcast %cst_20 : f32 to vector<16x128xf32>
    %44 = arith.mulf %43, %42 : vector<16x128xf32>
    %45 = arith.select %39, %37, %44 : vector<16x128xi1>, vector<16x128xf32>
    %c2 = arith.constant 2 : index
    %c0_21 = arith.constant 0 : index
    %c0_22 = arith.constant 0 : index
    %46 = vector.load %arg3[%c2, %c0_21, %c0_22] : memref<5x128x128xbf16, #tpu.memory_space<vmem>>, vector<1x128x128xbf16>
    %47 = vector.shape_cast %46 : vector<1x128x128xbf16> to vector<128x128xbf16>
    %48 = arith.truncf %45 : vector<16x128xf32> to vector<16x128xbf16>
    %cst_23 = arith.constant dense<0.000000e+00> : vector<16x128xf32>
    %49 = tpu.matmul %48, %47, %cst_23 {dimension_numbers = #tpu.dot_dimension_numbers<[1], [0], [0], [1], [0, 0, 1, 1], [], []>} : vector<16x128xbf16>, vector<128x128xbf16>, vector<16x128xf32> -> vector<16x128xf32>
    %50 = vector.extract_strided_slice %1 {offsets = [3, 0], sizes = [1, 128], strides = [1, 1]} : vector<8x128xf32> to vector<1x128xf32>
    %51 = vector.broadcast %50 : vector<1x128xf32> to vector<16x128xf32>
    %52 = arith.addf %49, %51 : vector<16x128xf32>
    %cst_24 = arith.constant 0.000000e+00 : f32
    %53 = vector.broadcast %cst_24 : f32 to vector<16x128xf32>
    %54 = arith.cmpf ogt, %52, %53 : vector<16x128xf32>
    %55 = math.exp %52 : vector<16x128xf32>
    %cst_25 = arith.constant 1.000000e+00 : f32
    %56 = vector.broadcast %cst_25 : f32 to vector<16x128xf32>
    %57 = arith.subf %55, %56 : vector<16x128xf32>
    %cst_26 = arith.constant 1.67326319 : f32
    %58 = vector.broadcast %cst_26 : f32 to vector<16x128xf32>
    %59 = arith.mulf %58, %57 : vector<16x128xf32>
    %60 = arith.select %54, %52, %59 : vector<16x128xi1>, vector<16x128xf32>
    %c3 = arith.constant 3 : index
    %c0_27 = arith.constant 0 : index
    %c0_28 = arith.constant 0 : index
    %61 = vector.load %arg3[%c3, %c0_27, %c0_28] : memref<5x128x128xbf16, #tpu.memory_space<vmem>>, vector<1x128x128xbf16>
    %62 = vector.shape_cast %61 : vector<1x128x128xbf16> to vector<128x128xbf16>
    %63 = arith.truncf %60 : vector<16x128xf32> to vector<16x128xbf16>
    %cst_29 = arith.constant dense<0.000000e+00> : vector<16x128xf32>
    %64 = tpu.matmul %63, %62, %cst_29 {dimension_numbers = #tpu.dot_dimension_numbers<[1], [0], [0], [1], [0, 0, 1, 1], [], []>} : vector<16x128xbf16>, vector<128x128xbf16>, vector<16x128xf32> -> vector<16x128xf32>
    %65 = vector.extract_strided_slice %1 {offsets = [4, 0], sizes = [1, 128], strides = [1, 1]} : vector<8x128xf32> to vector<1x128xf32>
    %66 = vector.broadcast %65 : vector<1x128xf32> to vector<16x128xf32>
    %67 = arith.addf %64, %66 : vector<16x128xf32>
    %cst_30 = arith.constant 0.000000e+00 : f32
    %68 = vector.broadcast %cst_30 : f32 to vector<16x128xf32>
    %69 = arith.cmpf ogt, %67, %68 : vector<16x128xf32>
    %70 = math.exp %67 : vector<16x128xf32>
    %cst_31 = arith.constant 1.000000e+00 : f32
    %71 = vector.broadcast %cst_31 : f32 to vector<16x128xf32>
    %72 = arith.subf %70, %71 : vector<16x128xf32>
    %cst_32 = arith.constant 1.67326319 : f32
    %73 = vector.broadcast %cst_32 : f32 to vector<16x128xf32>
    %74 = arith.mulf %73, %72 : vector<16x128xf32>
    %75 = arith.select %69, %67, %74 : vector<16x128xi1>, vector<16x128xf32>
    %c64_i32 = arith.constant 64 : i32
    %76 = vector.broadcast %c64_i32 : i32 to vector<1x128xi32>
    %77 = arith.cmpi slt, %2, %76 : vector<1x128xi32>
    %78 = vector.shape_cast %77 : vector<1x128xi1> to vector<1x128xi1>
    %79 = vector.broadcast %78 : vector<1x128xi1> to vector<16x128xi1>
    %80 = arith.select %79, %60, %75 : vector<16x128xi1>, vector<16x128xf32>
    %c4 = arith.constant 4 : index
    %c0_33 = arith.constant 0 : index
    %c0_34 = arith.constant 0 : index
    %81 = vector.load %arg3[%c4, %c0_33, %c0_34] : memref<5x128x128xbf16, #tpu.memory_space<vmem>>, vector<1x128x128xbf16>
    %82 = vector.shape_cast %81 : vector<1x128x128xbf16> to vector<128x128xbf16>
    %83 = arith.truncf %80 : vector<16x128xf32> to vector<16x128xbf16>
    %cst_35 = arith.constant dense<0.000000e+00> : vector<16x128xf32>
    %84 = tpu.matmul %83, %82, %cst_35 {dimension_numbers = #tpu.dot_dimension_numbers<[1], [0], [0], [1], [0, 0, 1, 1], [], []>} : vector<16x128xbf16>, vector<128x128xbf16>, vector<16x128xf32> -> vector<16x128xf32>
    %85 = vector.extract_strided_slice %1 {offsets = [5, 0], sizes = [1, 128], strides = [1, 1]} : vector<8x128xf32> to vector<1x128xf32>
    %86 = vector.broadcast %85 : vector<1x128xf32> to vector<16x128xf32>
    %87 = arith.addf %84, %86 : vector<16x128xf32>
    %c8_i32 = arith.constant 8 : i32
    %88 = vector.broadcast %c8_i32 : i32 to vector<1x128xi32>
    %89 = arith.cmpi slt, %2, %88 : vector<1x128xi32>
    %cst_36 = arith.constant 0xFF800000 : f32
    %90 = vector.shape_cast %89 : vector<1x128xi1> to vector<1x128xi1>
    %91 = vector.broadcast %90 : vector<1x128xi1> to vector<16x128xi1>
    %92 = vector.broadcast %cst_36 : f32 to vector<16x128xf32>
    %93 = arith.select %91, %87, %92 : vector<16x128xi1>, vector<16x128xf32>
    %cst_37 = arith.constant dense<0xFF800000> : vector<16xf32>
    %94 = vector.multi_reduction <maximumf>, %93, %cst_37 [1] : vector<16x128xf32> to vector<16xf32>
    %95 = vector.shape_cast %94 : vector<16xf32> to vector<16x1xf32>
    %96 = vector.broadcast %95 : vector<16x1xf32> to vector<16x128xf32>
    %97 = arith.subf %87, %96 : vector<16x128xf32>
    %98 = math.exp %97 : vector<16x128xf32>
    %cst_38 = arith.constant 0.000000e+00 : f32
    %99 = vector.shape_cast %89 : vector<1x128xi1> to vector<1x128xi1>
    %100 = vector.broadcast %99 : vector<1x128xi1> to vector<16x128xi1>
    %101 = vector.broadcast %cst_38 : f32 to vector<16x128xf32>
    %102 = arith.select %100, %98, %101 : vector<16x128xi1>, vector<16x128xf32>
    %cst_39 = arith.constant dense<0.000000e+00> : vector<16xf32>
    %103 = vector.multi_reduction <add>, %102, %cst_39 [1] : vector<16x128xf32> to vector<16xf32>
    %104 = vector.shape_cast %103 : vector<16xf32> to vector<16x1xf32>
    %105 = math.log %104 : vector<16x1xf32>
    %106 = vector.broadcast %105 : vector<16x1xf32> to vector<16x128xf32>
    %107 = arith.subf %97, %106 : vector<16x128xf32>
    %108 = vector.shape_cast %89 : vector<1x128xi1> to vector<1x128xi1>
    %109 = vector.broadcast %108 : vector<1x128xi1> to vector<16x128xi1>
    %110 = arith.select %109, %107, %87 : vector<16x128xi1>, vector<16x128xf32>
    %c0_40 = arith.constant 0 : index
    %c0_41 = arith.constant 0 : index
    %111 = vector.load %arg5[%c0_40, %c0_41] : memref<16x128xf32, #tpu.memory_space<vmem>>, vector<16x128xf32>
    tpu.vector_store %arg5[%c0_40, %c0_41], %110 {strides = array<i32>} : memref<16x128xf32, #tpu.memory_space<vmem>>, vector<16x128xf32>,
    return
  }
  func.func @transform_0(%arg0: i32) -> (i32, i32) {
    %c0_i32 = arith.constant 0 : i32
    %c0_i32_0 = arith.constant 0 : i32
    return %arg0, %c0_i32 : i32, i32
  }
  func.func @transform_1(%arg0: i32) -> (i32, i32) {
    %c0_i32 = arith.constant 0 : i32
    %c0_i32_0 = arith.constant 0 : i32
    %c0_i32_1 = arith.constant 0 : i32
    return %c0_i32, %c0_i32_0 : i32, i32
  }
  func.func @transform_2(%arg0: i32) -> (i32, i32, i32) {
    %c0_i32 = arith.constant 0 : i32
    %c0_i32_0 = arith.constant 0 : i32
    %c0_i32_1 = arith.constant 0 : i32
    %c0_i32_2 = arith.constant 0 : i32
    return %c0_i32, %c0_i32_0, %c0_i32_1 : i32, i32, i32
  }
  func.func @transform_3(%arg0: i32) -> (i32, i32) {
    %c0_i32 = arith.constant 0 : i32
    %c0_i32_0 = arith.constant 0 : i32
    %c0_i32_1 = arith.constant 0 : i32
    return %c0_i32, %c0_i32_0 : i32, i32
  }
  func.func @transform_4(%arg0: i32) -> (i32, i32) {
    %c0_i32 = arith.constant 0 : i32
    %c0_i32_0 = arith.constant 0 : i32
    return %arg0, %c0_i32 : i32, i32
  }
}

</mosaic_0001>

<llo_original>
// kernel: tpu_custom_call.1
$region0: #{tpu_custom_call.1}
  #allocation0 [shape = 'u32[]', space=smem, size = 0x4, offset = 0x4, fixed_abs, tag = 'smem constant byte address 0x4 - core index']
  #allocation1 [shape = 'u32[144,128]{1,0:T(1,128)}', space=vmem, size = 0x12000, scoped, tag = 'internal scratch']
  %s0 = inlined_call_operand.hbm [shape: bf16[16,32], index: 0, kind: input, shape index: {}]
  %s1 = inlined_call_operand.hbm [shape: bf16[32,128], index: 1, kind: input, shape index: {}]
  %s2 = inlined_call_operand.hbm [shape: bf16[5,128,128], index: 2, kind: input, shape index: {}]
  %s3 = inlined_call_operand.hbm [shape: f32[8,128], index: 3, kind: input, shape index: {}]
  %s4 = inlined_call_operand.hbm [shape: f32[16,128], index: 4, kind: output, shape index: {}]
  %s5 = sld [smem:[#allocation0]]
  $region42: #{tpu_custom_call.1} parent=0
    _
  %s7 = ssub.s32 1, %s5
  %s8 = scalar_select 0, %s7, %s5
  $region1: #{tpu_custom_call.1} parent=0
    #allocation2 [shape = 'u8[4096]{0}', space=vmem, size = 0x1000, scoped, tag = 'input window, operand 0, single buffered']
    #allocation3 [shape = 's32[1]{0}', space=sflag, size = 0x4, scoped, tag = 'scoped memory for tpu_custom_call.1']
    #allocation4 [shape = 's32[1]{0}', space=sflag, size = 0x4, scoped, tag = 'scoped memory for tpu_custom_call.1']
    #allocation5 [shape = 'u8[8192]{0}', space=vmem, size = 0x2000, scoped, tag = 'input window, operand 1, single buffered']
    #allocation6 [shape = 's32[1]{0}', space=sflag, size = 0x4, scoped, tag = 'scoped memory for tpu_custom_call.1']
    #allocation7 [shape = 'u8[163840]{0}', space=vmem, size = 0x28000, scoped, tag = 'input window, operand 2, single buffered']
    #allocation8 [shape = 'u8[4096]{0}', space=vmem, size = 0x1000, scoped, tag = 'input window, operand 3, single buffered']
    #allocation9 [shape = 's32[1]{0}', space=sflag, size = 0x4, scoped, tag = 'scoped memory for tpu_custom_call.1']
    #allocation10 [shape = 'u8[8192]{0}', space=vmem, size = 0x2000, scoped, tag = 'output window, operand 0, single buffered']
    %9 = vsyncpa [#allocation3], 0
    %10 = vsyncpa [#allocation6], 0
    %11 = vsyncpa [#allocation9], 0
    %12 = vsyncpa [#allocation4], 0
    // Predicated region
    $region2: #{tpu_custom_call.1} parent=1 // pred_check
      _
    $region3: #{tpu_custom_call.1} parent=1 // pred_check_branch
      %14 = sbr.rel (0) target = $region5
    $region4: #{tpu_custom_call.1} parent=1 // pred_region
      %s16 = ssub.s32 128, 128
      %17 = vsyncadd [#allocation3], %s16
      %s18 = sshll.u32 [#allocation2], 4
      %s19 = int_to_ptr.vmem [resolvable:$true] %s18
      %24 = dma.hbm_to_vmem [thread:$0]  %s0, 128, %s19, [#allocation3], 64, 64, 4
    $region5: #{tpu_custom_call.1} parent=1 // pred_fallthru
      _
    // Predicated region
    $region6: #{tpu_custom_call.1} parent=1 // pred_check
      _
    $region7: #{tpu_custom_call.1} parent=1 // pred_check_branch
      %26 = sbr.rel (0) target = $region9
    $region8: #{tpu_custom_call.1} parent=1 // pred_region
      %s28 = ssub.s32 256, 256
      %29 = vsyncadd [#allocation6], %s28
      %s30 = sshll.u32 [#allocation5], 4
      %s31 = int_to_ptr.vmem [resolvable:$true] %s30
      %36 = dma.hbm_to_vmem [thread:$0]  %s1, 256, %s31, [#allocation6], 64, 64, 4
    $region9: #{tpu_custom_call.1} parent=1 // pred_fallthru
      _
    // Predicated region
    $region10: #{tpu_custom_call.1} parent=1 // pred_check
      _
    $region11: #{tpu_custom_call.1} parent=1 // pred_check_branch
      %38 = sbr.rel (0) target = $region13
    $region12: #{tpu_custom_call.1} parent=1 // pred_region
      %s40 = ssub.s32 5120, 5120
      %41 = vsyncadd [#allocation6], %s40
      %s42 = sshll.u32 [#allocation7], 4
      %s43 = int_to_ptr.vmem [resolvable:$true] %s42
      %48 = dma.hbm_to_vmem [thread:$0]  %s2, 5120, %s43, [#allocation6], 64, 64, 4
    $region13: #{tpu_custom_call.1} parent=1 // pred_fallthru
      _
    // Predicated region
    $region14: #{tpu_custom_call.1} parent=1 // pred_check
      _
    $region15: #{tpu_custom_call.1} parent=1 // pred_check_branch
      %50 = sbr.rel (0) target = $region17
    $region16: #{tpu_custom_call.1} parent=1 // pred_region
      %s52 = ssub.s32 128, 128
      %53 = vsyncadd [#allocation9], %s52
      %s55 = sshll.u32 [#allocation8], 4
      %s56 = int_to_ptr.vmem [resolvable:$true] %s55
      %58 = dma.hbm_to_vmem [thread:$0]  %s3, 128, %s56, [#allocation9]
    $region17: #{tpu_custom_call.1} parent=1 // pred_fallthru
      _
    // Predicated region
    $region18: #{tpu_custom_call.1} parent=1 // pred_check
      _
    $region19: #{tpu_custom_call.1} parent=1 // pred_check_branch
      %60 = sbr.rel (0) target = $region21
    $region20: #{tpu_custom_call.1} parent=1 // pred_region
      %61 = dma.done [#allocation3], 128
    $region21: #{tpu_custom_call.1} parent=1 // pred_fallthru
      _
    // Predicated region
    $region22: #{tpu_custom_call.1} parent=1 // pred_check
      _
    $region23: #{tpu_custom_call.1} parent=1 // pred_check_branch
      %63 = sbr.rel (0) target = $region25
    $region24: #{tpu_custom_call.1} parent=1 // pred_region
      %64 = dma.done [#allocation6], 256
    $region25: #{tpu_custom_call.1} parent=1 // pred_fallthru
      _
    // Predicated region
    $region26: #{tpu_custom_call.1} parent=1 // pred_check
      _
    $region27: #{tpu_custom_call.1} parent=1 // pred_check_branch
      %66 = sbr.rel (0) target = $region29
    $region28: #{tpu_custom_call.1} parent=1 // pred_region
      %67 = dma.done [#allocation6], 5120
    $region29: #{tpu_custom_call.1} parent=1 // pred_fallthru
      _
    // Predicated region
    $region30: #{tpu_custom_call.1} parent=1 // pred_check
      _
    $region31: #{tpu_custom_call.1} parent=1 // pred_check_branch
      %69 = sbr.rel (0) target = $region33
    $region32: #{tpu_custom_call.1} parent=1 // pred_region
      %70 = dma.done [#allocation9], 128
    $region33: #{tpu_custom_call.1} parent=1 // pred_fallthru
      _
    %v72 = vld [vmem:[#allocation2] sm:$0xf]
    %v73 = vld [vmem:[#allocation2 + $0x4] sm:$0xf]
    %v74 = vld [vmem:[#allocation8] sm:$0xff]
    %v75 = vlaneseq
    %v76 = vand.u32 %v75, 127
    %v77 = vld [vmem:[#allocation5] sm:$0xf]
    %v78 = vld [vmem:[#allocation5 + $0x4] sm:$0xf]
    %v79 = vld [vmem:[#allocation5 + $0x8] sm:$0xf]
    %v80 = vld [vmem:[#allocation5 + $0xc] sm:$0xf]
    %v81 = vlaneseq
    %v82 = vshrl.u32 %v81, 7
    %v83 = vsub.s32 0, %v82
    %v84 = vrot.slane %v74, %v83
    %v87 = vunpack.c.l.b16 %v72
    %v88 = vunpack.c.l.b16 %v73
    %v89 = vpack.c.b16 %v88, %v87
    %v94 = vunpack.c.l.b16 %v77
    %v95 = vunpack.c.l.b16 %v78
    %v96 = vunpack.c.l.b16 %v79
    %v97 = vunpack.c.l.b16 %v80
    %v98 = vpack.c.b16 %v95, %v94
    %v99 = vpack.c.b16 %v97, %v96
    %vm102 = vcmask 261120
    %v104 = vsel %vm102, %v89, 0
    %106 = vmatprep.subr.bf16.mxu0 0
    %107 = vmatpush1.bf16.msra.mxu0 0
    %108 = vmatprep.subr.bf16.mxu0 0
    %109 = vmatpush1.bf16.msra.mxu0 0
    %110 = vmatprep.subr.bf16.mxu0 0
    %111 = vmatpush1.bf16.msra.mxu0 0
    %112 = vmatprep.subr.bf16.mxu0 0
    %113 = vmatpush1.bf16.msra.mxu0 0
    %114 = vmatprep.subr.bf16.mxu0 0
    %115 = vmatpush1.bf16.msra.mxu0 0
    %116 = vmatprep.subr.bf16.mxu0 0
    %117 = vmatpush1.bf16.msra.mxu0 0
    %118 = vmatprep.subr.bf16.mxu0 0
    %119 = vmatpush1.bf16.msra.mxu0 %v99
    %120 = vmatprep.subr.bf16.mxu0 0
    %121 = vmatpush1.bf16.msra.mxu0 %v98
    %122 = vmatprep.subr.bf16.mxu0 0
    %123 = vmatpush2.bf16.msra.mxu0 0
    %124 = vmatprep.subr.bf16.mxu0 0
    %125 = vmatpush2.bf16.msra.mxu0 0
    %126 = vmatprep.subr.bf16.mxu0 0
    %127 = vmatpush2.bf16.msra.mxu0 0
    %128 = vmatprep.subr.bf16.mxu0 0
    %129 = vmatpush2.bf16.msra.mxu0 0
    %130 = vmatprep.subr.bf16.mxu0 0
    %131 = vmatpush2.bf16.msra.mxu0 0
    %132 = vmatprep.subr.bf16.mxu0 0
    %133 = vmatpush2.bf16.msra.mxu0 0
    %134 = vmatprep.subr.bf16.mxu0 0
    %135 = vmatpush2.bf16.msra.mxu0 0
    %136 = vmatprep.subr.bf16.mxu0 0
    %137 = vmatpush2.bf16.msra.mxu0 0
    %138 = vmatprep.mubr.bf16.mxu0 0
    %139 = vmatmul.mubr.bf16.gmra.mxu0 %v104
    %v140 = vpop.f32.mrf.mxu0
    %v141 = vadd.f32 %v84, %v140
    %v142 = vpop.f32.mrf.mxu0
    %v143 = vpop.f32.mrf.mxu0
    %v144 = vadd.f32 %v84, %v143
    %v145 = vpop.f32.mrf.mxu0
    %146 = vdwg.mxu0
    %vm147 = vcmp.gt.f32.partialorder %v141, 0.0
    %vm148 = vcmp.gt.f32.partialorder %v144, 0.0
    %v149 = vmul.f32 %v141, 1.442695
    %v150 = vpow.pop %v149
    %v151 = vmul.f32 %v144, 1.442695
    %v152 = vpow.pop %v151
    %v153 = vsub.f32 %v150, 1.0
    %v154 = vsub.f32 %v152, 1.0
    %v155 = vmul.f32 %v153, 1.6732632
    %v156 = vmul.f32 %v154, 1.6732632
    %v157 = vsel %vm147, %v141, %v155
    %v158 = vsel %vm148, %v144, %v156
    %v159 = vld [vmem:[#allocation7] sm:$0xf]
    %v160 = vld [vmem:[#allocation7 + $0x4] sm:$0xf]
    %v161 = vld [vmem:[#allocation7 + $0x8] sm:$0xf]
    %v162 = vld [vmem:[#allocation7 + $0xc] sm:$0xf]
    %v163 = vld [vmem:[#allocation7 + $0x10] sm:$0xf]
    %v164 = vld [vmem:[#allocation7 + $0x14] sm:$0xf]
    %v165 = vld [vmem:[#allocation7 + $0x18] sm:$0xf]
    %v166 = vld [vmem:[#allocation7 + $0x1c] sm:$0xf]
    %v167 = vld [vmem:[#allocation7 + $0x20] sm:$0xf]
    %v168 = vld [vmem:[#allocation7 + $0x24] sm:$0xf]
    %v169 = vld [vmem:[#allocation7 + $0x28] sm:$0xf]
    %v170 = vld [vmem:[#allocation7 + $0x2c] sm:$0xf]
    %v171 = vld [vmem:[#allocation7 + $0x30] sm:$0xf]
    %v172 = vld [vmem:[#allocation7 + $0x34] sm:$0xf]
    %v173 = vld [vmem:[#allocation7 + $0x38] sm:$0xf]
    %v174 = vld [vmem:[#allocation7 + $0x3c] sm:$0xf]
    %v175 = vpack.c.bf16 %v158, %v157
    %v176 = vlaneseq
    %v177 = vshrl.u32 %v176, 7
    %v178 = vsub.s32 1, %v177
    %v179 = vrot.slane %v74, %v178
    %v196 = vunpack.c.l.b16 %v159
    %v197 = vunpack.c.l.b16 %v160
    %v198 = vunpack.c.l.b16 %v161
    %v199 = vunpack.c.l.b16 %v162
    %v200 = vunpack.c.l.b16 %v163
    %v201 = vunpack.c.l.b16 %v164
    %v202 = vunpack.c.l.b16 %v165
    %v203 = vunpack.c.l.b16 %v166
    %v204 = vunpack.c.l.b16 %v167
    %v205 = vunpack.c.l.b16 %v168
    %v206 = vunpack.c.l.b16 %v169
    %v207 = vunpack.c.l.b16 %v170
    %v208 = vunpack.c.l.b16 %v171
    %v209 = vunpack.c.l.b16 %v172
    %v210 = vunpack.c.l.b16 %v173
    %v211 = vunpack.c.l.b16 %v174
    %v212 = vpack.c.b16 %v197, %v196
    %v213 = vpack.c.b16 %v199, %v198
    %v214 = vpack.c.b16 %v201, %v200
    %v215 = vpack.c.b16 %v203, %v202
    %v216 = vpack.c.b16 %v205, %v204
    %v217 = vpack.c.b16 %v207, %v206
    %v218 = vpack.c.b16 %v209, %v208
    %v219 = vpack.c.b16 %v211, %v210
    %228 = vmatprep.subr.bf16.mxu0 0
    %229 = vmatpush1.bf16.msra.mxu0 %v219
    %230 = vmatprep.subr.bf16.mxu0 0
    %231 = vmatpush1.bf16.msra.mxu0 %v218
    %232 = vmatprep.subr.bf16.mxu0 0
    %233 = vmatpush1.bf16.msra.mxu0 %v217
    %234 = vmatprep.subr.bf16.mxu0 0
    %235 = vmatpush1.bf16.msra.mxu0 %v216
    %236 = vmatprep.subr.bf16.mxu0 0
    %237 = vmatpush1.bf16.msra.mxu0 %v215
    %238 = vmatprep.subr.bf16.mxu0 0
    %239 = vmatpush1.bf16.msra.mxu0 %v214
    %240 = vmatprep.subr.bf16.mxu0 0
    %241 = vmatpush1.bf16.msra.mxu0 %v213
    %242 = vmatprep.subr.bf16.mxu0 0
    %243 = vmatpush1.bf16.msra.mxu0 %v212
    %244 = vmatprep.subr.bf16.mxu0 0
    %245 = vmatpush2.bf16.msra.mxu0 0
    %246 = vmatprep.subr.bf16.mxu0 0
    %247 = vmatpush2.bf16.msra.mxu0 0
    %248 = vmatprep.subr.bf16.mxu0 0
    %249 = vmatpush2.bf16.msra.mxu0 0
    %250 = vmatprep.subr.bf16.mxu0 0
    %251 = vmatpush2.bf16.msra.mxu0 0
    %252 = vmatprep.subr.bf16.mxu0 0
    %253 = vmatpush2.bf16.msra.mxu0 0
    %254 = vmatprep.subr.bf16.mxu0 0
    %255 = vmatpush2.bf16.msra.mxu0 0
    %256 = vmatprep.subr.bf16.mxu0 0
    %257 = vmatpush2.bf16.msra.mxu0 0
    %258 = vmatprep.subr.bf16.mxu0 0
    %259 = vmatpush2.bf16.msra.mxu0 0
    %260 = vmatprep.mubr.bf16.mxu0 0
    %261 = vmatmul.mubr.bf16.gmra.mxu0 %v175
    %v262 = vpop.f32.mrf.mxu0
    %v263 = vadd.f32 %v179, %v262
    %v264 = vpop.f32.mrf.mxu0
    %v265 = vpop.f32.mrf.mxu0
    %v266 = vadd.f32 %v179, %v265
    %v267 = vpop.f32.mrf.mxu0
    %268 = vdwg.mxu0
    %vm269 = vcmp.gt.f32.partialorder %v263, 0.0
    %vm270 = vcmp.gt.f32.partialorder %v266, 0.0
    %v271 = vmul.f32 %v263, 1.442695
    %v272 = vpow.pop %v271
    %v273 = vmul.f32 %v266, 1.442695
    %v274 = vpow.pop %v273
    %v275 = vsub.f32 %v272, 1.0
    %v276 = vsub.f32 %v274, 1.0
    %v277 = vmul.f32 %v275, 1.6732632
    %v278 = vmul.f32 %v276, 1.6732632
    %v279 = vsel %vm269, %v263, %v277
    %v280 = vsel %vm270, %v266, %v278
    %s281 = scalar_lea.vmem [#allocation7], 64
    %v282 = vld [vmem:[%s281] sm:$0xf]
    %v283 = vld [vmem:[%s281 + $0x4] sm:$0xf]
    %v284 = vld [vmem:[%s281 + $0x8] sm:$0xf]
    %v285 = vld [vmem:[%s281 + $0xc] sm:$0xf]
    %v286 = vld [vmem:[%s281 + $0x10] sm:$0xf]
    %v287 = vld [vmem:[%s281 + $0x14] sm:$0xf]
    %v288 = vld [vmem:[%s281 + $0x18] sm:$0xf]
    %v289 = vld [vmem:[%s281 + $0x1c] sm:$0xf]
    %v290 = vld [vmem:[%s281 + $0x20] sm:$0xf]
    %v291 = vld [vmem:[%s281 + $0x24] sm:$0xf]
    %v292 = vld [vmem:[%s281 + $0x28] sm:$0xf]
    %v293 = vld [vmem:[%s281 + $0x2c] sm:$0xf]
    %v294 = vld [vmem:[%s281 + $0x30] sm:$0xf]
    %v295 = vld [vmem:[%s281 + $0x34] sm:$0xf]
    %v296 = vld [vmem:[%s281 + $0x38] sm:$0xf]
    %v297 = vld [vmem:[%s281 + $0x3c] sm:$0xf]
    %v298 = vpack.c.bf16 %v280, %v279
    %v299 = vlaneseq
    %v300 = vshrl.u32 %v299, 7
    %v301 = vsub.s32 2, %v300
    %v302 = vrot.slane %v74, %v301
    %v319 = vunpack.c.l.b16 %v282
    %v320 = vunpack.c.l.b16 %v283
    %v321 = vunpack.c.l.b16 %v284
    %v322 = vunpack.c.l.b16 %v285
    %v323 = vunpack.c.l.b16 %v286
    %v324 = vunpack.c.l.b16 %v287
    %v325 = vunpack.c.l.b16 %v288
    %v326 = vunpack.c.l.b16 %v289
    %v327 = vunpack.c.l.b16 %v290
    %v328 = vunpack.c.l.b16 %v291
    %v329 = vunpack.c.l.b16 %v292
    %v330 = vunpack.c.l.b16 %v293
    %v331 = vunpack.c.l.b16 %v294
    %v332 = vunpack.c.l.b16 %v295
    %v333 = vunpack.c.l.b16 %v296
    %v334 = vunpack.c.l.b16 %v297
    %v335 = vpack.c.b16 %v320, %v319
    %v336 = vpack.c.b16 %v322, %v321
    %v337 = vpack.c.b16 %v324, %v323
    %v338 = vpack.c.b16 %v326, %v325
    %v339 = vpack.c.b16 %v328, %v327
    %v340 = vpack.c.b16 %v330, %v329
    %v341 = vpack.c.b16 %v332, %v331
    %v342 = vpack.c.b16 %v334, %v333
    %351 = vmatprep.subr.bf16.mxu0 0
    %352 = vmatpush1.bf16.msra.mxu0 %v342
    %353 = vmatprep.subr.bf16.mxu0 0
    %354 = vmatpush1.bf16.msra.mxu0 %v341
    %355 = vmatprep.subr.bf16.mxu0 0
    %356 = vmatpush1.bf16.msra.mxu0 %v340
    %357 = vmatprep.subr.bf16.mxu0 0
    %358 = vmatpush1.bf16.msra.mxu0 %v339
    %359 = vmatprep.subr.bf16.mxu0 0
    %360 = vmatpush1.bf16.msra.mxu0 %v338
    %361 = vmatprep.subr.bf16.mxu0 0
    %362 = vmatpush1.bf16.msra.mxu0 %v337
    %363 = vmatprep.subr.bf16.mxu0 0
    %364 = vmatpush1.bf16.msra.mxu0 %v336
    %365 = vmatprep.subr.bf16.mxu0 0
    %366 = vmatpush1.bf16.msra.mxu0 %v335
    %367 = vmatprep.subr.bf16.mxu0 0
    %368 = vmatpush2.bf16.msra.mxu0 0
    %369 = vmatprep.subr.bf16.mxu0 0
    %370 = vmatpush2.bf16.msra.mxu0 0
    %371 = vmatprep.subr.bf16.mxu0 0
    %372 = vmatpush2.bf16.msra.mxu0 0
    %373 = vmatprep.subr.bf16.mxu0 0
    %374 = vmatpush2.bf16.msra.mxu0 0
    %375 = vmatprep.subr.bf16.mxu0 0
    %376 = vmatpush2.bf16.msra.mxu0 0
    %377 = vmatprep.subr.bf16.mxu0 0
    %378 = vmatpush2.bf16.msra.mxu0 0
    %379 = vmatprep.subr.bf16.mxu0 0
    %380 = vmatpush2.bf16.msra.mxu0 0
    %381 = vmatprep.subr.bf16.mxu0 0
    %382 = vmatpush2.bf16.msra.mxu0 0
    %383 = vmatprep.mubr.bf16.mxu0 0
    %384 = vmatmul.mubr.bf16.gmra.mxu0 %v298
    %v385 = vpop.f32.mrf.mxu0
    %v386 = vadd.f32 %v302, %v385
    %v387 = vpop.f32.mrf.mxu0
    %v388 = vpop.f32.mrf.mxu0
    %v389 = vadd.f32 %v302, %v388
    %v390 = vpop.f32.mrf.mxu0
    %391 = vdwg.mxu0
    %vm392 = vcmp.gt.f32.partialorder %v386, 0.0
    %vm393 = vcmp.gt.f32.partialorder %v389, 0.0
    %v394 = vmul.f32 %v386, 1.442695
    %v395 = vpow.pop %v394
    %v396 = vmul.f32 %v389, 1.442695
    %v397 = vpow.pop %v396
    %v398 = vsub.f32 %v395, 1.0
    %v399 = vsub.f32 %v397, 1.0
    %v400 = vmul.f32 %v398, 1.6732632
    %v401 = vmul.f32 %v399, 1.6732632
    %v402 = vsel %vm392, %v386, %v400
    %v403 = vsel %vm393, %v389, %v401
    %s404 = scalar_lea.vmem [#allocation7], 128
    %v405 = vld [vmem:[%s404] sm:$0xf]
    %v406 = vld [vmem:[%s404 + $0x4] sm:$0xf]
    %v407 = vld [vmem:[%s404 + $0x8] sm:$0xf]
    %v408 = vld [vmem:[%s404 + $0xc] sm:$0xf]
    %v409 = vld [vmem:[%s404 + $0x10] sm:$0xf]
    %v410 = vld [vmem:[%s404 + $0x14] sm:$0xf]
    %v411 = vld [vmem:[%s404 + $0x18] sm:$0xf]
    %v412 = vld [vmem:[%s404 + $0x1c] sm:$0xf]
    %v413 = vld [vmem:[%s404 + $0x20] sm:$0xf]
    %v414 = vld [vmem:[%s404 + $0x24] sm:$0xf]
    %v415 = vld [vmem:[%s404 + $0x28] sm:$0xf]
    %v416 = vld [vmem:[%s404 + $0x2c] sm:$0xf]
    %v417 = vld [vmem:[%s404 + $0x30] sm:$0xf]
    %v418 = vld [vmem:[%s404 + $0x34] sm:$0xf]
    %v419 = vld [vmem:[%s404 + $0x38] sm:$0xf]
    %v420 = vld [vmem:[%s404 + $0x3c] sm:$0xf]
    %v421 = vpack.c.bf16 %v403, %v402
    %v422 = vlaneseq
    %v423 = vshrl.u32 %v422, 7
    %v424 = vsub.s32 3, %v423
    %v425 = vrot.slane %v74, %v424
    %v442 = vunpack.c.l.b16 %v405
    %v443 = vunpack.c.l.b16 %v406
    %v444 = vunpack.c.l.b16 %v407
    %v445 = vunpack.c.l.b16 %v408
    %v446 = vunpack.c.l.b16 %v409
    %v447 = vunpack.c.l.b16 %v410
    %v448 = vunpack.c.l.b16 %v411
    %v449 = vunpack.c.l.b16 %v412
    %v450 = vunpack.c.l.b16 %v413
    %v451 = vunpack.c.l.b16 %v414
    %v452 = vunpack.c.l.b16 %v415
    %v453 = vunpack.c.l.b16 %v416
    %v454 = vunpack.c.l.b16 %v417
    %v455 = vunpack.c.l.b16 %v418
    %v456 = vunpack.c.l.b16 %v419
    %v457 = vunpack.c.l.b16 %v420
    %v458 = vpack.c.b16 %v443, %v442
    %v459 = vpack.c.b16 %v445, %v444
    %v460 = vpack.c.b16 %v447, %v446
    %v461 = vpack.c.b16 %v449, %v448
    %v462 = vpack.c.b16 %v451, %v450
    %v463 = vpack.c.b16 %v453, %v452
    %v464 = vpack.c.b16 %v455, %v454
    %v465 = vpack.c.b16 %v457, %v456
    %474 = vmatprep.subr.bf16.mxu0 0
    %475 = vmatpush1.bf16.msra.mxu0 %v465
    %476 = vmatprep.subr.bf16.mxu0 0
    %477 = vmatpush1.bf16.msra.mxu0 %v464
    %478 = vmatprep.subr.bf16.mxu0 0
    %479 = vmatpush1.bf16.msra.mxu0 %v463
    %480 = vmatprep.subr.bf16.mxu0 0
    %481 = vmatpush1.bf16.msra.mxu0 %v462
    %482 = vmatprep.subr.bf16.mxu0 0
    %483 = vmatpush1.bf16.msra.mxu0 %v461
    %484 = vmatprep.subr.bf16.mxu0 0
    %485 = vmatpush1.bf16.msra.mxu0 %v460
    %486 = vmatprep.subr.bf16.mxu0 0
    %487 = vmatpush1.bf16.msra.mxu0 %v459
    %488 = vmatprep.subr.bf16.mxu0 0
    %489 = vmatpush1.bf16.msra.mxu0 %v458
    %490 = vmatprep.subr.bf16.mxu0 0
    %491 = vmatpush2.bf16.msra.mxu0 0
    %492 = vmatprep.subr.bf16.mxu0 0
    %493 = vmatpush2.bf16.msra.mxu0 0
    %494 = vmatprep.subr.bf16.mxu0 0
    %495 = vmatpush2.bf16.msra.mxu0 0
    %496 = vmatprep.subr.bf16.mxu0 0
    %497 = vmatpush2.bf16.msra.mxu0 0
    %498 = vmatprep.subr.bf16.mxu0 0
    %499 = vmatpush2.bf16.msra.mxu0 0
    %500 = vmatprep.subr.bf16.mxu0 0
    %501 = vmatpush2.bf16.msra.mxu0 0
    %502 = vmatprep.subr.bf16.mxu0 0
    %503 = vmatpush2.bf16.msra.mxu0 0
    %504 = vmatprep.subr.bf16.mxu0 0
    %505 = vmatpush2.bf16.msra.mxu0 0
    %506 = vmatprep.mubr.bf16.mxu0 0
    %507 = vmatmul.mubr.bf16.gmra.mxu0 %v421
    %v508 = vpop.f32.mrf.mxu0
    %v509 = vadd.f32 %v425, %v508
    %v510 = vpop.f32.mrf.mxu0
    %v511 = vpop.f32.mrf.mxu0
    %v512 = vadd.f32 %v425, %v511
    %v513 = vpop.f32.mrf.mxu0
    %514 = vdwg.mxu0
    %vm515 = vcmp.gt.f32.partialorder %v509, 0.0
    %vm516 = vcmp.gt.f32.partialorder %v512, 0.0
    %v517 = vmul.f32 %v509, 1.442695
    %v518 = vpow.pop %v517
    %v519 = vmul.f32 %v512, 1.442695
    %v520 = vpow.pop %v519
    %v521 = vsub.f32 %v518, 1.0
    %v522 = vsub.f32 %v520, 1.0
    %v523 = vmul.f32 %v521, 1.6732632
    %v524 = vmul.f32 %v522, 1.6732632
    %v525 = vsel %vm515, %v509, %v523
    %v526 = vsel %vm516, %v512, %v524
    %s527 = scalar_lea.vmem [#allocation7], 192
    %v528 = vld [vmem:[%s527] sm:$0xf]
    %v529 = vld [vmem:[%s527 + $0x4] sm:$0xf]
    %v530 = vld [vmem:[%s527 + $0x8] sm:$0xf]
    %v531 = vld [vmem:[%s527 + $0xc] sm:$0xf]
    %v532 = vld [vmem:[%s527 + $0x10] sm:$0xf]
    %v533 = vld [vmem:[%s527 + $0x14] sm:$0xf]
    %v534 = vld [vmem:[%s527 + $0x18] sm:$0xf]
    %v535 = vld [vmem:[%s527 + $0x1c] sm:$0xf]
    %v536 = vld [vmem:[%s527 + $0x20] sm:$0xf]
    %v537 = vld [vmem:[%s527 + $0x24] sm:$0xf]
    %v538 = vld [vmem:[%s527 + $0x28] sm:$0xf]
    %v539 = vld [vmem:[%s527 + $0x2c] sm:$0xf]
    %v540 = vld [vmem:[%s527 + $0x30] sm:$0xf]
    %v541 = vld [vmem:[%s527 + $0x34] sm:$0xf]
    %v542 = vld [vmem:[%s527 + $0x38] sm:$0xf]
    %v543 = vld [vmem:[%s527 + $0x3c] sm:$0xf]
    %v544 = vpack.c.bf16 %v526, %v525
    %v545 = vlaneseq
    %v546 = vshrl.u32 %v545, 7
    %v547 = vsub.s32 4, %v546
    %v548 = vrot.slane %v74, %v547
    %v565 = vunpack.c.l.b16 %v528
    %v566 = vunpack.c.l.b16 %v529
    %v567 = vunpack.c.l.b16 %v530
    %v568 = vunpack.c.l.b16 %v531
    %v569 = vunpack.c.l.b16 %v532
    %v570 = vunpack.c.l.b16 %v533
    %v571 = vunpack.c.l.b16 %v534
    %v572 = vunpack.c.l.b16 %v535
    %v573 = vunpack.c.l.b16 %v536
    %v574 = vunpack.c.l.b16 %v537
    %v575 = vunpack.c.l.b16 %v538
    %v576 = vunpack.c.l.b16 %v539
    %v577 = vunpack.c.l.b16 %v540
    %v578 = vunpack.c.l.b16 %v541
    %v579 = vunpack.c.l.b16 %v542
    %v580 = vunpack.c.l.b16 %v543
    %v581 = vpack.c.b16 %v566, %v565
    %v582 = vpack.c.b16 %v568, %v567
    %v583 = vpack.c.b16 %v570, %v569
    %v584 = vpack.c.b16 %v572, %v571
    %v585 = vpack.c.b16 %v574, %v573
    %v586 = vpack.c.b16 %v576, %v575
    %v587 = vpack.c.b16 %v578, %v577
    %v588 = vpack.c.b16 %v580, %v579
    %597 = vmatprep.subr.bf16.mxu0 0
    %598 = vmatpush1.bf16.msra.mxu0 %v588
    %599 = vmatprep.subr.bf16.mxu0 0
    %600 = vmatpush1.bf16.msra.mxu0 %v587
    %601 = vmatprep.subr.bf16.mxu0 0
    %602 = vmatpush1.bf16.msra.mxu0 %v586
    %603 = vmatprep.subr.bf16.mxu0 0
    %604 = vmatpush1.bf16.msra.mxu0 %v585
    %605 = vmatprep.subr.bf16.mxu0 0
    %606 = vmatpush1.bf16.msra.mxu0 %v584
    %607 = vmatprep.subr.bf16.mxu0 0
    %608 = vmatpush1.bf16.msra.mxu0 %v583
    %609 = vmatprep.subr.bf16.mxu0 0
    %610 = vmatpush1.bf16.msra.mxu0 %v582
    %611 = vmatprep.subr.bf16.mxu0 0
    %612 = vmatpush1.bf16.msra.mxu0 %v581
    %613 = vmatprep.subr.bf16.mxu0 0
    %614 = vmatpush2.bf16.msra.mxu0 0
    %615 = vmatprep.subr.bf16.mxu0 0
    %616 = vmatpush2.bf16.msra.mxu0 0
    %617 = vmatprep.subr.bf16.mxu0 0
    %618 = vmatpush2.bf16.msra.mxu0 0
    %619 = vmatprep.subr.bf16.mxu0 0
    %620 = vmatpush2.bf16.msra.mxu0 0
    %621 = vmatprep.subr.bf16.mxu0 0
    %622 = vmatpush2.bf16.msra.mxu0 0
    %623 = vmatprep.subr.bf16.mxu0 0
    %624 = vmatpush2.bf16.msra.mxu0 0
    %625 = vmatprep.subr.bf16.mxu0 0
    %626 = vmatpush2.bf16.msra.mxu0 0
    %627 = vmatprep.subr.bf16.mxu0 0
    %628 = vmatpush2.bf16.msra.mxu0 0
    %629 = vmatprep.mubr.bf16.mxu0 0
    %630 = vmatmul.mubr.bf16.gmra.mxu0 %v544
    %v631 = vpop.f32.mrf.mxu0
    %v632 = vadd.f32 %v548, %v631
    %v633 = vpop.f32.mrf.mxu0
    %v634 = vpop.f32.mrf.mxu0
    %v635 = vadd.f32 %v548, %v634
    %v636 = vpop.f32.mrf.mxu0
    %637 = vdwg.mxu0
    %vm638 = vcmp.gt.f32.partialorder %v632, 0.0
    %vm639 = vcmp.gt.f32.partialorder %v635, 0.0
    %v640 = vmul.f32 %v632, 1.442695
    %v641 = vpow.pop %v640
    %v642 = vmul.f32 %v635, 1.442695
    %v643 = vpow.pop %v642
    %v644 = vsub.f32 %v641, 1.0
    %v645 = vsub.f32 %v643, 1.0
    %v646 = vmul.f32 %v644, 1.6732632
    %v647 = vmul.f32 %v645, 1.6732632
    %v648 = vsel %vm638, %v632, %v646
    %v649 = vsel %vm639, %v635, %v647
    %vm650 = vcmp.lt.s32.totalorder %v76, 64
    %v651 = vsel %vm650, 1, 0
    %vm652 = vcmp.eq.s32.totalorder %v651, 1
    %v653 = vsel %vm652, %v525, %v648
    %v654 = vsel %vm652, %v526, %v649
    %s655 = scalar_lea.vmem [#allocation7], 256
    %v656 = vld [vmem:[%s655] sm:$0xf]
    %v657 = vld [vmem:[%s655 + $0x4] sm:$0xf]
    %v658 = vld [vmem:[%s655 + $0x8] sm:$0xf]
    %v659 = vld [vmem:[%s655 + $0xc] sm:$0xf]
    %v660 = vld [vmem:[%s655 + $0x10] sm:$0xf]
    %v661 = vld [vmem:[%s655 + $0x14] sm:$0xf]
    %v662 = vld [vmem:[%s655 + $0x18] sm:$0xf]
    %v663 = vld [vmem:[%s655 + $0x1c] sm:$0xf]
    %v664 = vld [vmem:[%s655 + $0x20] sm:$0xf]
    %v665 = vld [vmem:[%s655 + $0x24] sm:$0xf]
    %v666 = vld [vmem:[%s655 + $0x28] sm:$0xf]
    %v667 = vld [vmem:[%s655 + $0x2c] sm:$0xf]
    %v668 = vld [vmem:[%s655 + $0x30] sm:$0xf]
    %v669 = vld [vmem:[%s655 + $0x34] sm:$0xf]
    %v670 = vld [vmem:[%s655 + $0x38] sm:$0xf]
    %v671 = vld [vmem:[%s655 + $0x3c] sm:$0xf]
    %v672 = vpack.c.bf16 %v654, %v653
    %v673 = vlaneseq
    %v674 = vshrl.u32 %v673, 7
    %v675 = vsub.s32 5, %v674
    %v676 = vrot.slane %v74, %v675
    %v693 = vunpack.c.l.b16 %v656
    %v694 = vunpack.c.l.b16 %v657
    %v695 = vunpack.c.l.b16 %v658
    %v696 = vunpack.c.l.b16 %v659
    %v697 = vunpack.c.l.b16 %v660
    %v698 = vunpack.c.l.b16 %v661
    %v699 = vunpack.c.l.b16 %v662
    %v700 = vunpack.c.l.b16 %v663
    %v701 = vunpack.c.l.b16 %v664
    %v702 = vunpack.c.l.b16 %v665
    %v703 = vunpack.c.l.b16 %v666
    %v704 = vunpack.c.l.b16 %v667
    %v705 = vunpack.c.l.b16 %v668
    %v706 = vunpack.c.l.b16 %v669
    %v707 = vunpack.c.l.b16 %v670
    %v708 = vunpack.c.l.b16 %v671
    %v709 = vpack.c.b16 %v694, %v693
    %v710 = vpack.c.b16 %v696, %v695
    %v711 = vpack.c.b16 %v698, %v697
    %v712 = vpack.c.b16 %v700, %v699
    %v713 = vpack.c.b16 %v702, %v701
    %v714 = vpack.c.b16 %v704, %v703
    %v715 = vpack.c.b16 %v706, %v705
    %v716 = vpack.c.b16 %v708, %v707
    %725 = vmatprep.subr.bf16.mxu0 0
    %726 = vmatpush1.bf16.msra.mxu0 %v716
    %727 = vmatprep.subr.bf16.mxu0 0
    %728 = vmatpush1.bf16.msra.mxu0 %v715
    %729 = vmatprep.subr.bf16.mxu0 0
    %730 = vmatpush1.bf16.msra.mxu0 %v714
    %731 = vmatprep.subr.bf16.mxu0 0
    %732 = vmatpush1.bf16.msra.mxu0 %v713
    %733 = vmatprep.subr.bf16.mxu0 0
    %734 = vmatpush1.bf16.msra.mxu0 %v712
    %735 = vmatprep.subr.bf16.mxu0 0
    %736 = vmatpush1.bf16.msra.mxu0 %v711
    %737 = vmatprep.subr.bf16.mxu0 0
    %738 = vmatpush1.bf16.msra.mxu0 %v710
    %739 = vmatprep.subr.bf16.mxu0 0
    %740 = vmatpush1.bf16.msra.mxu0 %v709
    %741 = vmatprep.subr.bf16.mxu0 0
    %742 = vmatpush2.bf16.msra.mxu0 0
    %743 = vmatprep.subr.bf16.mxu0 0
    %744 = vmatpush2.bf16.msra.mxu0 0
    %745 = vmatprep.subr.bf16.mxu0 0
    %746 = vmatpush2.bf16.msra.mxu0 0
    %747 = vmatprep.subr.bf16.mxu0 0
    %748 = vmatpush2.bf16.msra.mxu0 0
    %749 = vmatprep.subr.bf16.mxu0 0
    %750 = vmatpush2.bf16.msra.mxu0 0
    %751 = vmatprep.subr.bf16.mxu0 0
    %752 = vmatpush2.bf16.msra.mxu0 0
    %753 = vmatprep.subr.bf16.mxu0 0
    %754 = vmatpush2.bf16.msra.mxu0 0
    %755 = vmatprep.subr.bf16.mxu0 0
    %756 = vmatpush2.bf16.msra.mxu0 0
    %757 = vmatprep.mubr.bf16.mxu0 0
    %758 = vmatmul.mubr.bf16.gmra.mxu0 %v672
    %v759 = vpop.f32.mrf.mxu0
    %v760 = vadd.f32 %v676, %v759
    %v761 = vpop.f32.mrf.mxu0
    %v762 = vpop.f32.mrf.mxu0
    %v763 = vadd.f32 %v676, %v762
    %v764 = vpop.f32.mrf.mxu0
    %765 = vdwg.mxu0
    %vm766 = vcmp.lt.s32.totalorder %v76, 8
    %v767 = vsel %vm766, 1, 0
    %vm768 = vcmp.eq.s32.totalorder %v767, 1
    %v769 = vsel %vm768, %v760, -inf
    %v770 = vsel %vm768, %v763, -inf
    %771 = vmax.xlane.f32.xlu0 %v769
    %v772 = vpop.xlane.xlu0 %771
    %773 = vmax.xlane.f32.xlu0 %v770
    %v774 = vpop.xlane.xlu0 %773
    %v775 = vsub.f32 %v760, %v772
    %v776 = vsub.f32 %v763, %v774
    %v777 = vmul.f32 %v775, 1.442695
    %v778 = vpow.pop %v777
    %v779 = vmul.f32 %v776, 1.442695
    %v780 = vpow.pop %v779
    %v781 = vsel %vm768, %v778, 0.0
    %v782 = vsel %vm768, %v780, 0.0
    %783 = vadd.xlane.f32.xlu0 %v781
    %v784 = vpop.xlane.xlu0 %783
    %785 = vadd.xlane.f32.xlu0 %v782
    %v786 = vpop.xlane.xlu0 %785
    %v787 = vlog2.pop %v784
    %v788 = vmul.f32 %v787, 0.6931472
    %v789 = vlog2.pop %v786
    %v790 = vmul.f32 %v789, 0.6931472
    %v791 = vsub.f32 %v775, %v788
    %v792 = vsub.f32 %v776, %v790
    %v793 = vsel %vm768, %v791, %v760
    %v794 = vsel %vm768, %v792, %v763
    %795 = vst [vmem:[#allocation10] sm:$0xff] %v793
    %796 = vst [vmem:[#allocation10 + $0x8] sm:$0xff] %v794
    // Predicated region
    $region34: #{tpu_custom_call.1} parent=1 // pred_check
      _
    $region35: #{tpu_custom_call.1} parent=1 // pred_check_branch
      %798 = sbr.rel (0) target = $region37
    $region36: #{tpu_custom_call.1} parent=1 // pred_region
      %s800 = ssub.s32 256, 256
      %801 = vsyncadd [#allocation4], %s800
      %s802 = sshll.u32 [#allocation10], 4
      %s803 = int_to_ptr.vmem [resolvable:$true] %s802
      %808 = dma.vmem_to_hbm [thread:$0]  %s803, 256, %s4, [#allocation4], 128, 128, 8
    $region37: #{tpu_custom_call.1} parent=1 // pred_fallthru
      _
    // Predicated region
    $region38: #{tpu_custom_call.1} parent=1 // pred_check
      _
    $region39: #{tpu_custom_call.1} parent=1 // pred_check_branch
      %810 = sbr.rel (0) target = $region41
    $region40: #{tpu_custom_call.1} parent=1 // pred_region
      %811 = dma.done [#allocation4], 256
    $region41: #{tpu_custom_call.1} parent=1 // pred_fallthru
      _
    %812 = vsyncpa [#allocation3], 1
    %813 = vsyncpa [#allocation6], 1
    %814 = vsyncpa [#allocation9], 1
    %815 = vsyncpa [#allocation4], 1

</llo_original>
